<compile_context>
chip_gen: v5e
topology: v5e:2x2
jax: 0.10.0
libtpu: 0.0.40
codegen_flags: <defaults>
</compile_context>

<pallas_src>
import jax
import jax.numpy as jnp
from jax.experimental import pallas as pl
from jax.experimental.pallas import tpu as pltpu


def _prompt_kernel(ctx_ref, prefix_ref, suffix_ref, out_ref):
    """Assemble prompts for one tile of `tc` classes.

    ctx_ref:    (n_ctx, ctx_dim)        shared learnable context (VMEM-resident)
    prefix_ref: (tc, 1, ctx_dim)        per-class SOS embedding
    suffix_ref: (tc, suf_len, ctx_dim)  per-class class-name + EOS embeddings
    out_ref:    (tc, seq_len, ctx_dim)
    """
    tc = out_ref.shape[0]
    n_ctx, ctx_dim = ctx_ref.shape
    # Broadcast the shared ctx across the class tile once (hoisted per step).
    ctx_b = jnp.broadcast_to(ctx_ref[...][None, :, :], (tc, n_ctx, ctx_dim))
    # Single full-tile, lane-dense store of the concatenated prompt slab.
    out_ref[...] = jnp.concatenate(
        [prefix_ref[...], ctx_b, suffix_ref[...]], axis=1)


def _vmem_capacity_bytes():
    """Physical VMEM per TensorCore; conservative 64 MiB (v7x) fallback."""
    try:
        return int(getattr(pltpu.get_tpu_info(), "vmem_capacity_bytes", 64 << 20))
    except Exception:
        return 64 << 20


def _pick_class_tile(n_cls, per_class_bytes, vmem_cap):
    """Largest class tile whose double-buffered blocks use <~45% of VMEM."""
    budget = int(0.45 * vmem_cap)
    tc = max(1, budget // (2 * per_class_bytes))
    tc = min(tc, n_cls)
    # Prefer an even number of class tiles so the "parallel" grid axis can be
    # split across v7x's two TensorCores (no-op on single-core v5e/v6e).
    n_tiles = -(-n_cls // tc)
    if n_tiles > 1 and n_tiles % 2 == 1:
        n_tiles += 1
        tc = -(-n_cls // n_tiles)
    return max(1, tc)


def construct_prompts(ctx, prefix, suffix, *, class_tile=None):
    """Pallas implementation of VLPromptLearner.forward().

    prompts[c] = concat([prefix[c], ctx, suffix[c]], axis=0) for every class c.
    """
    if ctx.ndim != 2:
        raise ValueError(f"ctx must be (n_ctx, ctx_dim), got shape {ctx.shape}")
    if prefix.ndim != 3 or suffix.ndim != 3:
        raise ValueError("prefix/suffix must be rank-3 (n_cls, rows, ctx_dim)")

    n_cls, pre_len, ctx_dim = prefix.shape
    n_ctx = ctx.shape[0]
    suf_len = suffix.shape[1]
    if pre_len != 1:
        raise ValueError(f"prefix must have one SOS row per class, got {pre_len}")
    if ctx.shape[1] != ctx_dim or suffix.shape[2] != ctx_dim:
        raise ValueError("ctx / suffix last dim must match prefix ctx_dim")
    if suffix.shape[0] != n_cls:
        raise ValueError("prefix and suffix must have the same number of classes")

    seq_len = 1 + n_ctx + suf_len

    # Unify dtypes up front (mixed fp16 CLIP embeddings vs fp32 ctx happens);
    # avoids implicit casts inside the kernel.
    out_dtype = jnp.result_type(ctx.dtype, prefix.dtype, suffix.dtype)
    ctx = ctx.astype(out_dtype)
    prefix = prefix.astype(out_dtype)
    suffix = suffix.astype(out_dtype)

    itemsize = jnp.dtype(out_dtype).itemsize
    # Bytes of (prefix + suffix + output) blocks per class, single buffer set.
    per_class_bytes = (1 + suf_len + seq_len) * ctx_dim * itemsize

    vmem_cap = _vmem_capacity_bytes()
    if class_tile is None:
        tc = _pick_class_tile(n_cls, per_class_bytes, vmem_cap)
    else:
        tc = max(1, min(int(class_tile), n_cls))

    num_tiles = pl.cdiv(n_cls, tc)

    # Raise the scoped VMEM limit above the default to fit the double-buffered
    # blocks plus the resident ctx, with headroom, staying under physical cap.
    ctx_bytes = n_ctx * ctx_dim * itemsize
    needed = 2 * (tc * per_class_bytes + ctx_bytes)
    vmem_limit = int(max(32 << 20, min(needed + (16 << 20), int(0.9 * vmem_cap))))

    return pl.pallas_call(
        _prompt_kernel,
        out_shape=jax.ShapeDtypeStruct((n_cls, seq_len, ctx_dim), out_dtype),
        grid=(num_tiles,),
        in_specs=[
            # ctx is shared across all classes -> constant block index, so
            # Pallas skips re-DMA and it stays VMEM-resident across grid steps.
            pl.BlockSpec((n_ctx, ctx_dim), lambda i: (0, 0)),
            pl.BlockSpec((tc, 1, ctx_dim), lambda i: (i, 0, 0)),
            pl.BlockSpec((tc, suf_len, ctx_dim), lambda i: (i, 0, 0)),
        ],
        out_specs=pl.BlockSpec((tc, seq_len, ctx_dim), lambda i: (i, 0, 0)),
        compiler_params=pltpu.CompilerParams(
            dimension_semantics=("parallel",),
            vmem_limit_bytes=vmem_limit,
        ),
    )(ctx, prefix, suffix)


if __name__ == "__main__":
    key = jax.random.PRNGKey(0)
    key1, key2 = jax.random.split(key)

    def make_inputs(k, n_cls, n_ctx, ctx_dim, seq_len, dtype):
        suf_len = seq_len - 1 - n_ctx
        k_ctx, k_pre, k_suf = jax.random.split(k, 3)
        ctx = 0.02 * jax.random.normal(k_ctx, (n_ctx, ctx_dim), dtype=dtype)
        prefix = jax.random.normal(k_pre, (n_cls, 1, ctx_dim), dtype=dtype)
        suffix = jax.random.normal(k_suf, (n_cls, suf_len, ctx_dim), dtype=dtype)
        return ctx, prefix, suffix

    def reference(ctx, prefix, suffix):
        n_cls = prefix.shape[0]
        ctx_e = jnp.broadcast_to(ctx[None], (n_cls,) + ctx.shape)
        return jnp.concatenate([prefix, ctx_e, suffix], axis=1)

    # Case 1: small, module-consistent shapes (n_ctx=4 as in VLPromptLearner,
    # lane-aligned ctx_dim=128 stand-in for CLIP's 512, seq_len=16 stand-in
    # for 77). Everything fits one class tile -> single grid step, full-array
    # blocks.
    ctx, pre, suf = make_inputs(key1, n_cls=8, n_ctx=4, ctx_dim=128,
                                seq_len=16, dtype=jnp.float32)
    prompts = jax.block_until_ready(construct_prompts(ctx, pre, suf))
    ref = reference(ctx, pre, suf)
    assert prompts.shape == ref.shape
    assert prompts.dtype == ref.dtype
    assert jnp.array_equal(prompts, ref)

    # Case 2: more classes with a forced smaller class tile -> multi-step grid
    # with a partial last tile, exercising the tiled/pipelined path.
    ctx2, pre2, suf2 = make_inputs(key2, n_cls=37, n_ctx=4, ctx_dim=128,
                                   seq_len=16, dtype=jnp.float32)
    prompts2 = jax.block_until_ready(
        construct_prompts(ctx2, pre2, suf2, class_tile=16))
    ref2 = reference(ctx2, pre2, suf2)
    assert prompts2.shape == ref2.shape
    assert jnp.array_equal(prompts2, ref2)

    print("KERNEL_OK")
</pallas_src>

<mosaic_0001>
module attributes {stable_mosaic.version = 11 : i64} {
  func.func @_prompt_kernel(%arg0: i32, %arg1: memref<4x128xf32, #tpu.memory_space<vmem>>, %arg2: memref<8x1x128xf32, #tpu.memory_space<vmem>>, %arg3: memref<8x11x128xf32, #tpu.memory_space<vmem>>, %arg4: memref<8x16x128xf32, #tpu.memory_space<vmem>>) attributes {dimension_semantics = [#tpu.dimension_semantics<parallel>], iteration_bounds = array<i64: 1>, scalar_prefetch = 0 : i64, scratch_operands = 0 : i64, tpu.core_type = #tpu.core_type<tc>, window_params = [{pipeline_mode = #tpu.pipeline_mode<synchronous>, transform_indices = @transform_0, window_bounds = array<i64: 4, 128>}, {transform_indices = @transform_1, window_bounds = array<i64: 8, 1, 128>}, {transform_indices = @transform_2, window_bounds = array<i64: 8, 11, 128>}, {transform_indices = @transform_3, window_bounds = array<i64: 8, 16, 128>}]} {
    %c0 = arith.constant 0 : index
    %c0_0 = arith.constant 0 : index
    %0 = vector.load %arg1[%c0, %c0_0] : memref<4x128xf32, #tpu.memory_space<vmem>>, vector<4x128xf32>
    %1 = vector.shape_cast %0 : vector<4x128xf32> to vector<1x4x128xf32>
    %2 = vector.shape_cast %1 : vector<1x4x128xf32> to vector<1x4x128xf32>
    %3 = vector.broadcast %2 : vector<1x4x128xf32> to vector<8x4x128xf32>
    %c0_1 = arith.constant 0 : index
    %c0_2 = arith.constant 0 : index
    %c0_3 = arith.constant 0 : index
    %4 = vector.load %arg2[%c0_1, %c0_2, %c0_3] : memref<8x1x128xf32, #tpu.memory_space<vmem>>, vector<8x1x128xf32>
    %c0_4 = arith.constant 0 : index
    %c0_5 = arith.constant 0 : index
    %c0_6 = arith.constant 0 : index
    %5 = vector.load %arg3[%c0_4, %c0_5, %c0_6] : memref<8x11x128xf32, #tpu.memory_space<vmem>>, vector<8x11x128xf32>
    %6 = tpu.concatenate %4, %3, %5 in 1 : vector<8x1x128xf32>, vector<8x4x128xf32>, vector<8x11x128xf32> -> vector<8x16x128xf32>
    %c0_7 = arith.constant 0 : index
    %c0_8 = arith.constant 0 : index
    %c0_9 = arith.constant 0 : index
    %7 = vector.load %arg4[%c0_7, %c0_8, %c0_9] : memref<8x16x128xf32, #tpu.memory_space<vmem>>, vector<8x16x128xf32>
    tpu.vector_store %arg4[%c0_7, %c0_8, %c0_9], %6 {strides = array<i32>} : memref<8x16x128xf32, #tpu.memory_space<vmem>>, vector<8x16x128xf32>,
    return
  }
  func.func @transform_0(%arg0: i32) -> (i32, i32) {
    %c0_i32 = arith.constant 0 : i32
    %c0_i32_0 = arith.constant 0 : i32
    %c0_i32_1 = arith.constant 0 : i32
    return %c0_i32, %c0_i32_0 : i32, i32
  }
  func.func @transform_1(%arg0: i32) -> (i32, i32, i32) {
    %c0_i32 = arith.constant 0 : i32
    %c0_i32_0 = arith.constant 0 : i32
    %c0_i32_1 = arith.constant 0 : i32
    return %arg0, %c0_i32, %c0_i32_0 : i32, i32, i32
  }
  func.func @transform_2(%arg0: i32) -> (i32, i32, i32) {
    %c0_i32 = arith.constant 0 : i32
    %c0_i32_0 = arith.constant 0 : i32
    %c0_i32_1 = arith.constant 0 : i32
    return %arg0, %c0_i32, %c0_i32_0 : i32, i32, i32
  }
  func.func @transform_3(%arg0: i32) -> (i32, i32, i32) {
    %c0_i32 = arith.constant 0 : i32
    %c0_i32_0 = arith.constant 0 : i32
    %c0_i32_1 = arith.constant 0 : i32
    return %arg0, %c0_i32, %c0_i32_0 : i32, i32, i32
  }
}

</mosaic_0001>

<llo_original>
// kernel: tpu_custom_call.1
$region0: #{tpu_custom_call.1}
  #allocation0 [shape = 'u32[]', space=smem, size = 0x4, offset = 0x4, fixed_abs, tag = 'smem constant byte address 0x4 - core index']
  #allocation1 [shape = 'u32[72,128]{1,0:T(1,128)}', space=vmem, size = 0x9000, scoped, tag = 'internal scratch']
  %s0 = inlined_call_operand.vmem [shape: f32[4,128], index: 0, kind: input, shape index: {}]
  %s1 = inlined_call_operand.vmem [shape: f32[8,1,128], index: 1, kind: input, shape index: {}]
  %s2 = inlined_call_operand.vmem [shape: f32[8,11,128], index: 2, kind: input, shape index: {}]
  %s3 = inlined_call_operand.hbm [shape: f32[8,16,128], index: 3, kind: output, shape index: {}]
  %s4 = sld [smem:[#allocation0]]
  $region22: #{tpu_custom_call.1} parent=0
    _
  %s6 = ssub.s32 1, %s4
  %s7 = scalar_select 0, %s6, %s4
  $region1: #{tpu_custom_call.1} parent=0
    #allocation2 [shape = 'u8[65536]{0}', space=vmem, size = 0x10000, scoped, tag = 'output window, operand 0, single buffered']
    #allocation3 [shape = 's32[1]{0}', space=sflag, size = 0x4, scoped, tag = 'scoped memory for tpu_custom_call.1']
    %8 = vsyncpa [#allocation3], 0
    // Predicated region
    $region2: #{tpu_custom_call.1} parent=1 // pred_check
      _
    $region3: #{tpu_custom_call.1} parent=1 // pred_check_branch
      %10 = sbr.rel (0) target = $region5
    $region4: #{tpu_custom_call.1} parent=1 // pred_region
      _
    $region5: #{tpu_custom_call.1} parent=1 // pred_fallthru
      _
    // Predicated region
    $region6: #{tpu_custom_call.1} parent=1 // pred_check
      _
    $region7: #{tpu_custom_call.1} parent=1 // pred_check_branch
      %12 = sbr.rel (0) target = $region9
    $region8: #{tpu_custom_call.1} parent=1 // pred_region
      _
    $region9: #{tpu_custom_call.1} parent=1 // pred_fallthru
      _
    // Predicated region
    $region10: #{tpu_custom_call.1} parent=1 // pred_check
      _
    $region11: #{tpu_custom_call.1} parent=1 // pred_check_branch
      %14 = sbr.rel (0) target = $region13
    $region12: #{tpu_custom_call.1} parent=1 // pred_region
      _
    $region13: #{tpu_custom_call.1} parent=1 // pred_fallthru
      _
    %v15 = vld [vmem:[%s0] sm:$0xf]
    %v16 = vld [vmem:[%s1] sm:$0x1]
    %v17 = vld [vmem:[%s1 + $0x1] sm:$0x1]
    %v18 = vld [vmem:[%s1 + $0x2] sm:$0x1]
    %v19 = vld [vmem:[%s1 + $0x3] sm:$0x1]
    %v20 = vld [vmem:[%s1 + $0x4] sm:$0x1]
    %v21 = vld [vmem:[%s1 + $0x5] sm:$0x1]
    %v22 = vld [vmem:[%s1 + $0x6] sm:$0x1]
    %v23 = vld [vmem:[%s1 + $0x7] sm:$0x1]
    %v24 = vld [vmem:[%s2] sm:$0xff]
    %v25 = vld [vmem:[%s2 + $0x8] sm:$0x7]
    %v26 = vld [vmem:[%s2 + $0x10] sm:$0xff]
    %v27 = vld [vmem:[%s2 + $0x18] sm:$0x7]
    %v28 = vld [vmem:[%s2 + $0x20] sm:$0xff]
    %v29 = vld [vmem:[%s2 + $0x28] sm:$0x7]
    %v30 = vld [vmem:[%s2 + $0x30] sm:$0xff]
    %v31 = vld [vmem:[%s2 + $0x38] sm:$0x7]
    %v32 = vld [vmem:[%s2 + $0x40] sm:$0xff]
    %v33 = vld [vmem:[%s2 + $0x48] sm:$0x7]
    %v34 = vld [vmem:[%s2 + $0x50] sm:$0xff]
    %v35 = vld [vmem:[%s2 + $0x58] sm:$0x7]
    %v36 = vld [vmem:[%s2 + $0x60] sm:$0xff]
    %v37 = vld [vmem:[%s2 + $0x68] sm:$0x7]
    %v38 = vld [vmem:[%s2 + $0x70] sm:$0xff]
    %v39 = vld [vmem:[%s2 + $0x78] sm:$0x7]
    %v41 = vrot.slane %v15, 7
    %vm59 = vcmask 1044480
    %v60 = vrot.slane %v24, 3
    %v61 = vrot.slane %v25, 3
    %v62 = vsel %vm59, %v60, %v61
    %v63 = vrot.slane %v26, 3
    %v64 = vrot.slane %v27, 3
    %v65 = vsel %vm59, %v63, %v64
    %v66 = vrot.slane %v28, 3
    %v67 = vrot.slane %v29, 3
    %v68 = vsel %vm59, %v66, %v67
    %v69 = vrot.slane %v30, 3
    %v70 = vrot.slane %v31, 3
    %v71 = vsel %vm59, %v69, %v70
    %v72 = vrot.slane %v32, 3
    %v73 = vrot.slane %v33, 3
    %v74 = vsel %vm59, %v72, %v73
    %v75 = vrot.slane %v34, 3
    %v76 = vrot.slane %v35, 3
    %v77 = vsel %vm59, %v75, %v76
    %v78 = vrot.slane %v36, 3
    %v79 = vrot.slane %v37, 3
    %v80 = vsel %vm59, %v78, %v79
    %v81 = vrot.slane %v38, 3
    %v82 = vrot.slane %v39, 3
    %v83 = vsel %vm59, %v81, %v82
    %vm100 = vcmask 1040384
    %v101 = vsel %vm100, %v16, %v41
    %v102 = vsel %vm100, %v17, %v41
    %v103 = vsel %vm100, %v18, %v41
    %v104 = vsel %vm100, %v19, %v41
    %v105 = vsel %vm100, %v20, %v41
    %v106 = vsel %vm100, %v21, %v41
    %v107 = vsel %vm100, %v22, %v41
    %v108 = vsel %vm100, %v23, %v41
    %v109 = vsel %vm59, %v101, %v60
    %v110 = vsel %vm59, %v102, %v63
    %v111 = vsel %vm59, %v103, %v66
    %v112 = vsel %vm59, %v104, %v69
    %v113 = vsel %vm59, %v105, %v72
    %v114 = vsel %vm59, %v106, %v75
    %v115 = vsel %vm59, %v107, %v78
    %v116 = vsel %vm59, %v108, %v81
    %117 = vst [vmem:[#allocation2] sm:$0xff] %v109
    %118 = vst [vmem:[#allocation2 + $0x8] sm:$0xff] %v62
    %119 = vst [vmem:[#allocation2 + $0x10] sm:$0xff] %v110
    %120 = vst [vmem:[#allocation2 + $0x18] sm:$0xff] %v65
    %121 = vst [vmem:[#allocation2 + $0x20] sm:$0xff] %v111
    %122 = vst [vmem:[#allocation2 + $0x28] sm:$0xff] %v68
    %123 = vst [vmem:[#allocation2 + $0x30] sm:$0xff] %v112
    %124 = vst [vmem:[#allocation2 + $0x38] sm:$0xff] %v71
    %125 = vst [vmem:[#allocation2 + $0x40] sm:$0xff] %v113
    %126 = vst [vmem:[#allocation2 + $0x48] sm:$0xff] %v74
    %127 = vst [vmem:[#allocation2 + $0x50] sm:$0xff] %v114
    %128 = vst [vmem:[#allocation2 + $0x58] sm:$0xff] %v77
    %129 = vst [vmem:[#allocation2 + $0x60] sm:$0xff] %v115
    %130 = vst [vmem:[#allocation2 + $0x68] sm:$0xff] %v80
    %131 = vst [vmem:[#allocation2 + $0x70] sm:$0xff] %v116
    %132 = vst [vmem:[#allocation2 + $0x78] sm:$0xff] %v83
    // Predicated region
    $region14: #{tpu_custom_call.1} parent=1 // pred_check
      _
    $region15: #{tpu_custom_call.1} parent=1 // pred_check_branch
      %134 = sbr.rel (0) target = $region17
    $region16: #{tpu_custom_call.1} parent=1 // pred_region
      %136 = vsyncadd [#allocation3], 0
      %s137 = sshll.u32 [#allocation2], 4
      %s138 = int_to_ptr.vmem [resolvable:$true] %s137
      %s139 = sshll.u32 %s3, 4
      %s140 = int_to_ptr.hbm [resolvable:$true] %s139
      %145 = dma.vmem_to_hbm [thread:$0]  %s138, 2048, %s140, [#allocation3], 128, 128, 8
    $region17: #{tpu_custom_call.1} parent=1 // pred_fallthru
      _
    // Predicated region
    $region18: #{tpu_custom_call.1} parent=1 // pred_check
      _
    $region19: #{tpu_custom_call.1} parent=1 // pred_check_branch
      %147 = sbr.rel (0) target = $region21
    $region20: #{tpu_custom_call.1} parent=1 // pred_region
      %149 = dma.done [#allocation3], 2048
    $region21: #{tpu_custom_call.1} parent=1 // pred_fallthru
      _
    %150 = vsyncpa [#allocation3], 1

</llo_original>
